<compile_context>
chip_gen: v5e
topology: v5e:2x2
jax: 0.10.0
libtpu: 0.0.40
codegen_flags: <defaults>
</compile_context>

<pallas_src>
import jax
import jax.numpy as jnp
from jax.experimental import pallas as pl
from jax.experimental.pallas import tpu as pltpu

_MiB = 1024 * 1024


def _ceil_div(a, b):
    return -(-a // b)


def _round_up(a, m):
    return _ceil_div(a, m) * m


def _vmem_capacity_bytes():
    """Per-core VMEM capacity; conservative 64 MiB (v7x-class) if unqueryable."""
    try:
        return int(pltpu.get_tpu_info().vmem_capacity_bytes)
    except Exception:
        return 64 * _MiB


def _num_tensorcores():
    """TensorCores sharing the 1-D 'parallel' grid (v7x has 2 per chip).

    Planning for 2 on a 1-core chip only adds a couple of harmless extra grid
    steps, so default conservatively to 2 when the device does not expose it.
    """
    try:
        n = int(getattr(jax.devices()[0], "num_cores", 2))
        return max(1, min(n, 8))
    except Exception:
        return 2


def _bic_kernel(alpha_ref, beta_ref, x_ref, o_ref):
    # alpha_ref / beta_ref: (1,) f32 scalars in SMEM
    # x_ref / o_ref: (tm, width) tiles in VMEM
    a = alpha_ref[0]
    b = beta_ref[0]
    o_ref[...] = (a * x_ref[...].astype(jnp.float32) + b).astype(o_ref.dtype)


def bic_layer(x, alpha, beta, *, target_block_bytes=None, donate_input=False):
    """Applies y = alpha * x + beta elementwise (NCHW or any shape)."""
    orig_shape = x.shape
    orig_dtype = x.dtype
    total = x.size

    alpha32 = jnp.asarray(alpha, dtype=jnp.float32).reshape((1,))
    beta32 = jnp.asarray(beta, dtype=jnp.float32).reshape((1,))

    if total == 0:
        return x

    LANE = 128
    if total % LANE != 0:
        # TODO(synk): ragged (non-multiple-of-128) element counts fall back to a
        # single fused XLA affine instead of an in-kernel masked remainder.
        return (alpha32[0] * x.astype(jnp.float32) + beta32[0]).astype(orig_dtype)

    # ---- generation-aware sizing --------------------------------------------
    vmem_cap = _vmem_capacity_bytes()
    num_cores = _num_tensorcores()
    if target_block_bytes is None:
        # v7x-class (<=96 MiB VMEM): 6 MiB blocks; v5e/v6e (128 MiB): 8 MiB.
        target_block_bytes = 6 * _MiB if vmem_cap <= 96 * _MiB else 8 * _MiB
    # Keep 2x(in)+2x(out) double buffers at <= half of physical VMEM.
    target_block_bytes = max(256 * 1024, min(target_block_bytes, vmem_cap // 8))
    vmem_limit = max(32 * _MiB,
                     min(vmem_cap * 3 // 4, 4 * target_block_bytes + 8 * _MiB))

    # ---- lane-dense slab ------------------------------------------------------
    # Widest width that evenly divides the flat size; contiguous reshape -> no
    # HBM copy.  Fewer grid steps + long unmasked vst runs.
    width = LANE
    for w in (16384, 8192, 4096, 2048, 1024, 512, 256):
        if total % w == 0:
            width = w
            break
    M = total // width
    x2d = x.reshape(M, width)
    itemsize = x2d.dtype.itemsize
    row_bytes = width * itemsize

    # dtype-native sublane multiple: 8 (f32) / 16 (bf16) / 32 (int8, fp8).
    sub = max(8, 8 * (4 // itemsize))

    # ---- block-row choice -----------------------------------------------------
    if M <= sub:
        tm = M          # block == full array dims -> satisfies the (8,128) rule
        grid = (1,)
    else:
        tm = max(sub, (target_block_bytes // row_bytes) // sub * sub)
        # Guarantee >= 2 grid steps per TensorCore so read/write DMA overlap is
        # never lost, but never shrink a block below ~1 MiB.
        cap = _round_up(_ceil_div(M, 2 * num_cores), sub)
        cap = max(cap, _round_up(_ceil_div(1 * _MiB, row_bytes), sub))
        tm = min(tm, cap)
        if tm >= M:
            tm = M
            grid = (1,)
        else:
            n = _ceil_div(M, tm)
            # Small odd grids leave one core an extra step; nudge to an even
            # multiple of the core count (negligible for large grids).
            if n <= 16 and n % num_cores != 0:
                n_even = _round_up(n, num_cores)
                tm_even = _round_up(_ceil_div(M, n_even), sub)
                if tm_even >= sub and _ceil_div(M, tm_even) % num_cores == 0:
                    tm = tm_even
                    n = _ceil_div(M, tm)
            grid = (n,)

    # ---- pallas_call ----------------------------------------------------------
    operands = (alpha32, beta32, x2d)   # x kept LAST; alias index derived below
    kwargs = {}
    if donate_input:
        # Reuse x2d's HBM buffer for the output.  Only safe when the caller no
        # longer needs x (and the enclosing jit actually donates it).
        kwargs["input_output_aliases"] = {len(operands) - 1: 0}

    out2d = pl.pallas_call(
        _bic_kernel,
        out_shape=jax.ShapeDtypeStruct((M, width), x2d.dtype),
        grid_spec=pltpu.PrefetchScalarGridSpec(
            num_scalar_prefetch=0,
            grid=grid,
            in_specs=[
                pl.BlockSpec(memory_space=pltpu.SMEM),        # alpha (f32)
                pl.BlockSpec(memory_space=pltpu.SMEM),        # beta  (f32)
                pl.BlockSpec((tm, width), lambda i: (i, 0)),  # x tile
            ],
            out_specs=pl.BlockSpec((tm, width), lambda i: (i, 0)),
        ),
        compiler_params=pltpu.CompilerParams(
            dimension_semantics=("parallel",),
            vmem_limit_bytes=vmem_limit,
        ),
        **kwargs,
    )(*operands)

    return out2d.reshape(orig_shape)


if __name__ == "__main__":
    key = jax.random.PRNGKey(0)

    # Deterministic parameter init exactly as BicLayer.__init__:
    alpha = jnp.ones((1,), dtype=jnp.float32)
    beta = jnp.zeros((1,), dtype=jnp.float32)

    # 1) NCHW input matching the PyTorch conv-style convention.
    x = jax.random.normal(key, (2, 4, 16, 16), dtype=jnp.float32)
    y = jax.block_until_ready(bic_layer(x, alpha, beta))
    ref = alpha[0] * x + beta[0]
    assert y.shape == x.shape and y.dtype == x.dtype
    assert jnp.allclose(y, ref, atol=1e-6, rtol=1e-6)

    # 2) Slightly larger f32 case: exercises the multi-step parallel grid and
    #    non-trivial alpha/beta.
    k2, k3 = jax.random.split(key)
    x2 = jax.random.normal(k2, (8, 8, 64, 128), dtype=jnp.float32)
    a2 = jnp.asarray([1.25], dtype=jnp.float32)
    b2 = jnp.asarray([-0.5], dtype=jnp.float32)
    y2 = jax.block_until_ready(bic_layer(x2, a2, b2))
    ref2 = a2[0] * x2 + b2[0]
    assert jnp.allclose(y2, ref2, atol=1e-5, rtol=1e-5)

    # 3) bf16 activations: exercises the dtype-aware sublane rounding path.
    x3 = jax.random.normal(k3, (2, 3, 40, 40), dtype=jnp.float32).astype(jnp.bfloat16)
    y3 = jax.block_until_ready(bic_layer(x3, alpha, beta))
    ref3 = (alpha[0] * x3.astype(jnp.float32) + beta[0]).astype(jnp.bfloat16)
    assert y3.dtype == jnp.bfloat16 and jnp.array_equal(y3, ref3)

    print("KERNEL_OK")
</pallas_src>

<mosaic_0001>
module attributes {stable_mosaic.version = 11 : i64} {
  func.func @_bic_kernel(%arg0: i32, %arg1: memref<1xf32, #tpu.memory_space<smem>>, %arg2: memref<1xf32, #tpu.memory_space<smem>>, %arg3: memref<1x2048xf32, #tpu.memory_space<vmem>>, %arg4: memref<1x2048xf32, #tpu.memory_space<vmem>>) attributes {dimension_semantics = [#tpu.dimension_semantics<parallel>], iteration_bounds = array<i64: 1>, scalar_prefetch = 0 : i64, scratch_operands = 0 : i64, tpu.core_type = #tpu.core_type<tc>, window_params = [{transform_indices = @transform_0, window_bounds = array<i64: 1>}, {transform_indices = @transform_1, window_bounds = array<i64: 1>}, {transform_indices = @transform_2, window_bounds = array<i64: 1, 2048>}, {transform_indices = @transform_3, window_bounds = array<i64: 1, 2048>}]} {
    %c0 = arith.constant 0 : index
    %0 = memref.load %arg1[%c0] : memref<1xf32, #tpu.memory_space<smem>>
    %c0_0 = arith.constant 0 : index
    %1 = memref.load %arg2[%c0_0] : memref<1xf32, #tpu.memory_space<smem>>
    %c0_1 = arith.constant 0 : index
    %c0_2 = arith.constant 0 : index
    %2 = vector.load %arg3[%c0_1, %c0_2] : memref<1x2048xf32, #tpu.memory_space<vmem>>, vector<1x2048xf32>
    %3 = vector.broadcast %0 : f32 to vector<1x2048xf32>
    %4 = arith.mulf %3, %2 : vector<1x2048xf32>
    %5 = vector.broadcast %1 : f32 to vector<1x2048xf32>
    %6 = arith.addf %4, %5 : vector<1x2048xf32>
    %c0_3 = arith.constant 0 : index
    %c0_4 = arith.constant 0 : index
    %7 = vector.load %arg4[%c0_3, %c0_4] : memref<1x2048xf32, #tpu.memory_space<vmem>>, vector<1x2048xf32>
    tpu.vector_store %arg4[%c0_3, %c0_4], %6 {strides = array<i32>} : memref<1x2048xf32, #tpu.memory_space<vmem>>, vector<1x2048xf32>,
    return
  }
  func.func @transform_0(%arg0: i32) -> i32 {
    %c0_i32 = arith.constant 0 : i32
    %c0_i32_0 = arith.constant 0 : i32
    return %c0_i32 : i32
  }
  func.func @transform_1(%arg0: i32) -> i32 {
    %c0_i32 = arith.constant 0 : i32
    %c0_i32_0 = arith.constant 0 : i32
    return %c0_i32 : i32
  }
  func.func @transform_2(%arg0: i32) -> (i32, i32) {
    %c0_i32 = arith.constant 0 : i32
    %c0_i32_0 = arith.constant 0 : i32
    return %arg0, %c0_i32 : i32, i32
  }
  func.func @transform_3(%arg0: i32) -> (i32, i32) {
    %c0_i32 = arith.constant 0 : i32
    %c0_i32_0 = arith.constant 0 : i32
    return %arg0, %c0_i32 : i32, i32
  }
}

</mosaic_0001>

<llo_original>
// kernel: tpu_custom_call.1
$region0: #{tpu_custom_call.1}
  #allocation0 [shape = 'u32[]', space=smem, size = 0x4, offset = 0x4, fixed_abs, tag = 'smem constant byte address 0x4 - core index']
  #allocation1 [shape = 'u32[72,128]{1,0:T(1,128)}', space=vmem, size = 0x9000, scoped, tag = 'internal scratch']
  #allocation2 [shape = 'f32[1]{0:T(128)S(6)}', space=smem, size = 0x200, scoped, tag = 'scoped memory for tpu_custom_call.1']
  #allocation3 [shape = 'f32[1]{0:T(128)S(6)}', space=smem, size = 0x200, scoped, tag = 'scoped memory for tpu_custom_call.1']
  %s0 = inlined_call_operand.<no memory space> [shape: f32[1], index: 0, kind: input, shape index: {}]
  %s1 = inlined_call_operand.<no memory space> [shape: f32[1], index: 1, kind: input, shape index: {}]
  %s2 = inlined_call_operand.hbm [shape: f32[1,2048], index: 2, kind: input, shape index: {}]
  %s3 = inlined_call_operand.hbm [shape: f32[1,2048], index: 3, kind: output, shape index: {}]
  %s4 = sld [smem:[#allocation0]]
  $region26: #{tpu_custom_call.1} parent=0
    _
  %s6 = ssub.s32 1, %s4
  %s7 = scalar_select 0, %s6, %s4
  %8 = sst [smem:[#allocation2]] %s0
  %9 = sst [smem:[#allocation3]] %s1
  $region1: #{tpu_custom_call.1} parent=0
    #allocation4 [shape = 'u8[8192]{0}', space=vmem, size = 0x2000, scoped, tag = 'input window, operand 2, single buffered']
    #allocation5 [shape = 's32[1]{0}', space=sflag, size = 0x4, scoped, tag = 'scoped memory for tpu_custom_call.1']
    #allocation6 [shape = 's32[1]{0}', space=sflag, size = 0x4, scoped, tag = 'scoped memory for tpu_custom_call.1']
    #allocation7 [shape = 'u8[8192]{0}', space=vmem, size = 0x2000, scoped, tag = 'output window, operand 0, single buffered']
    %10 = vsyncpa [#allocation5], 0
    %11 = vsyncpa [#allocation6], 0
    // Predicated region
    $region2: #{tpu_custom_call.1} parent=1 // pred_check
      _
    $region3: #{tpu_custom_call.1} parent=1 // pred_check_branch
      %13 = sbr.rel (0) target = $region5
    $region4: #{tpu_custom_call.1} parent=1 // pred_region
      _
    $region5: #{tpu_custom_call.1} parent=1 // pred_fallthru
      _
    // Predicated region
    $region6: #{tpu_custom_call.1} parent=1 // pred_check
      _
    $region7: #{tpu_custom_call.1} parent=1 // pred_check_branch
      %15 = sbr.rel (0) target = $region9
    $region8: #{tpu_custom_call.1} parent=1 // pred_region
      _
    $region9: #{tpu_custom_call.1} parent=1 // pred_fallthru
      _
    // Predicated region
    $region10: #{tpu_custom_call.1} parent=1 // pred_check
      _
    $region11: #{tpu_custom_call.1} parent=1 // pred_check_branch
      %17 = sbr.rel (0) target = $region13
    $region12: #{tpu_custom_call.1} parent=1 // pred_region
      %19 = vsyncadd [#allocation5], 0
      %s21 = sshll.u32 %s2, 4
      %s22 = int_to_ptr.hbm [resolvable:$true] %s21
      %s23 = sshll.u32 [#allocation4], 4
      %s24 = int_to_ptr.vmem [resolvable:$true] %s23
      %26 = dma.hbm_to_vmem [thread:$0]  %s22, 256, %s24, [#allocation5]
    $region13: #{tpu_custom_call.1} parent=1 // pred_fallthru
      _
    // Predicated region
    $region14: #{tpu_custom_call.1} parent=1 // pred_check
      _
    $region15: #{tpu_custom_call.1} parent=1 // pred_check_branch
      %28 = sbr.rel (0) target = $region17
    $region16: #{tpu_custom_call.1} parent=1 // pred_region
      %30 = dma.done [#allocation5], 256
    $region17: #{tpu_custom_call.1} parent=1 // pred_fallthru
      _
    %s31 = sld [smem:[#allocation2]]
    %s32 = sld [smem:[#allocation3]]
    %v33 = vld [vmem:[#allocation4] sm:$0xff]
    %v34 = vld [vmem:[#allocation4 + $0x8] sm:$0xff]
    %v35 = vstv %s31
    %v36 = vmul.f32 %v35, %v33
    %v37 = vmul.f32 %v35, %v34
    %v38 = vstv %s32
    %v39 = vadd.f32 %v36, %v38
    %v40 = vadd.f32 %v37, %v38
    %41 = vst [vmem:[#allocation7] sm:$0xff] %v39
    %42 = vst [vmem:[#allocation7 + $0x8] sm:$0xff] %v40
    // Predicated region
    $region18: #{tpu_custom_call.1} parent=1 // pred_check
      _
    $region19: #{tpu_custom_call.1} parent=1 // pred_check_branch
      %44 = sbr.rel (0) target = $region21
    $region20: #{tpu_custom_call.1} parent=1 // pred_region
      %46 = vsyncadd [#allocation6], 0
      %s48 = sshll.u32 [#allocation7], 4
      %s49 = int_to_ptr.vmem [resolvable:$true] %s48
      %s50 = sshll.u32 %s3, 4
      %s51 = int_to_ptr.hbm [resolvable:$true] %s50
      %53 = dma.vmem_to_hbm [thread:$0]  %s49, 256, %s51, [#allocation6]
    $region21: #{tpu_custom_call.1} parent=1 // pred_fallthru
      _
    // Predicated region
    $region22: #{tpu_custom_call.1} parent=1 // pred_check
      _
    $region23: #{tpu_custom_call.1} parent=1 // pred_check_branch
      %55 = sbr.rel (0) target = $region25
    $region24: #{tpu_custom_call.1} parent=1 // pred_region
      %57 = dma.done [#allocation6], 256
    $region25: #{tpu_custom_call.1} parent=1 // pred_fallthru
      _
    %58 = vsyncpa [#allocation5], 1
    %59 = vsyncpa [#allocation6], 1

</llo_original>
